<compile_context>
chip_gen: v7x
topology: tpu7x:2x2x1
jax: 0.10.0
libtpu: 0.0.40
codegen_flags: <defaults>
</compile_context>

<pallas_src>
import jax
import jax.numpy as jnp
from jax import lax
from jax.experimental import pallas as pl
from jax.experimental.pallas import tpu as pltpu

LN_EPS = 1e-5  # torch.nn.LayerNorm default


def _round_up(x, m):
    return ((x + m - 1) // m) * m


def _to_patches_kernel(x_ref, w_ref, m_ref, p_ref, o_ref):
    """One tile of G-packed tokens.

    x_ref: (tile_m, G*patch_dim)  packed patches (G tokens per 128-lane row)
    w_ref: (G*patch_dim, G*dim)   kron(I_G, W)  block-diagonal projection
    m_ref: (G*dim, G*dim)         block-diagonal averaging matrix (entries 1/dim)
    p_ref: (3, G*dim)             [bias; gamma; beta], each tiled G times
    o_ref: (tile_m, G*dim)        packed outputs
    """
    y = jnp.dot(x_ref[...], w_ref[...], preferred_element_type=jnp.float32)
    y = y + p_ref[0:1, :]
    # Segmented (per-token) mean via matmul: lane b of `mean` holds the mean
    # over the dim-wide lane group that lane b belongs to.
    mean = jnp.dot(y, m_ref[...], preferred_element_type=jnp.float32)
    diff = y - mean
    var = jnp.dot(diff * diff, m_ref[...], preferred_element_type=jnp.float32)
    y_norm = diff * lax.rsqrt(var + LN_EPS)
    o_ref[...] = (y_norm * p_ref[1:2, :] + p_ref[2:3, :]).astype(o_ref.dtype)


def _unfold_patches(x, patch_size):
    """F.unfold(kernel=stride=p).movedim(1, -1) equivalent. x: [B, C, H, W]."""
    B, C, H, W = x.shape
    p = patch_size
    assert H % p == 0 and W % p == 0
    Hp, Wp = H // p, W // p
    x = x.reshape(B, C, Hp, p, Wp, p)
    x = jnp.transpose(x, (0, 2, 4, 1, 3, 5))      # (B, Hp, Wp, C, p, p)
    return x.reshape(B, Hp * Wp, C * p * p)       # feature order (C, kh, kw)


def to_patches(x, weight, bias, gamma, beta, patch_size, *, tile_rows=512):
    """x: [B, C, H, W] (NCHW). weight: [patch_dim, dim], y = patches @ weight + bias."""
    B = x.shape[0]
    patches = _unfold_patches(x, patch_size)          # (B, L, patch_dim)
    L, patch_dim = patches.shape[1], patches.shape[2]
    dim = weight.shape[1]
    N = B * L

    # Lane-packing factor: pack G tokens per 128-lane row when dim < 128.
    G = 128 // dim if (dim < 128 and 128 % dim == 0) else 1
    WK = G * patch_dim                                # packed feature width
    WD = G * dim                                      # packed output width

    flat = patches.reshape(N, patch_dim)

    # Pad the token count so packed rows are a multiple of 8 (sublanes) and of
    # the tile size; padded rows are dropped after the kernel.
    rows = -(-N // G)
    tile_m = min(tile_rows, _round_up(rows, 8))
    rows_pad = _round_up(rows, tile_m)
    n_pad = rows_pad * G
    if n_pad != N:
        flat = jnp.pad(flat, ((0, n_pad - N), (0, 0)))
    x_wide = flat.reshape(rows_pad, WK)               # free row-major reshape

    # Block-diagonal projection weight and LayerNorm averaging matrix.
    if G > 1:
        w_wide = jnp.kron(jnp.eye(G, dtype=weight.dtype), weight)
    else:
        w_wide = weight
    grp = jnp.arange(WD) // dim
    avg = (grp[:, None] == grp[None, :]).astype(jnp.float32) / dim

    params = jnp.stack(
        [
            jnp.tile(bias.astype(jnp.float32), G),
            jnp.tile(gamma.astype(jnp.float32), G),
            jnp.tile(beta.astype(jnp.float32), G),
        ],
        axis=0,
    )                                                  # (3, WD)

    out_wide = pl.pallas_call(
        _to_patches_kernel,
        out_shape=jax.ShapeDtypeStruct((rows_pad, WD), x.dtype),
        grid_spec=pltpu.PrefetchScalarGridSpec(
            num_scalar_prefetch=0,
            grid=(rows_pad // tile_m,),
            in_specs=[
                pl.BlockSpec((tile_m, WK), lambda i: (i, 0)),
                pl.BlockSpec((WK, WD), lambda i: (0, 0)),
                pl.BlockSpec((WD, WD), lambda i: (0, 0)),
                pl.BlockSpec((3, WD), lambda i: (0, 0)),
            ],
            out_specs=pl.BlockSpec((tile_m, WD), lambda i: (i, 0)),
        ),
        compiler_params=pltpu.CompilerParams(
            dimension_semantics=("parallel",),
            vmem_limit_bytes=32 * 1024 * 1024,
        ),
    )(x_wide, w_wide, avg, params)

    out = out_wide.reshape(n_pad, dim)[:N]             # free unpack + drop pad
    return out.reshape(B, L, dim)


def to_patches_ref(x, weight, bias, gamma, beta, patch_size):
    patches = _unfold_patches(x, patch_size)
    y = jnp.einsum("blk,kd->bld", patches, weight) + bias
    mean = jnp.mean(y, axis=-1, keepdims=True)
    var = jnp.mean((y - mean) ** 2, axis=-1, keepdims=True)
    return (y - mean) * lax.rsqrt(var + LN_EPS) * gamma + beta


if __name__ == "__main__":
    # Module config: in_channels=4, dim=32, patch_size=4
    B, C, H, W = 2, 4, 16, 16
    patch_size = 4
    dim = 32
    patch_dim = C * patch_size ** 2  # 64

    key = jax.random.PRNGKey(0)
    kx, kw, kb = jax.random.split(key, 3)

    x = jax.random.normal(kx, (B, C, H, W), dtype=jnp.float32)

    # Deterministic synthetic parameters (shapes from nn.Linear / nn.LayerNorm)
    weight = jax.random.normal(kw, (patch_dim, dim), dtype=jnp.float32) * 0.05
    bias = jax.random.normal(kb, (dim,), dtype=jnp.float32) * 0.01
    gamma = jnp.ones((dim,), dtype=jnp.float32)   # LayerNorm weight init
    beta = jnp.zeros((dim,), dtype=jnp.float32)   # LayerNorm bias init

    out = to_patches(x, weight, bias, gamma, beta, patch_size)
    out = jax.block_until_ready(out)

    ref = to_patches_ref(x, weight, bias, gamma, beta, patch_size)
    assert out.shape == (B, (H // patch_size) * (W // patch_size), dim)
    assert jnp.allclose(out, ref, atol=1e-4, rtol=1e-4)

    print("KERNEL_OK")
</pallas_src>

<mosaic_0001>
module attributes {stable_mosaic.version = 11 : i64} {
  func.func @_to_patches_kernel(%arg0: i32, %arg1: memref<8x256xf32, #tpu.memory_space<vmem>>, %arg2: memref<256x128xf32, #tpu.memory_space<vmem>>, %arg3: memref<128x128xf32, #tpu.memory_space<vmem>>, %arg4: memref<3x128xf32, #tpu.memory_space<vmem>>, %arg5: memref<8x128xf32, #tpu.memory_space<vmem>>) attributes {dimension_semantics = [#tpu.dimension_semantics<parallel>], iteration_bounds = array<i64: 1>, scalar_prefetch = 0 : i64, scratch_operands = 0 : i64, tpu.core_type = #tpu.core_type<tc>, window_params = [{transform_indices = @transform_0, window_bounds = array<i64: 8, 256>}, {pipeline_mode = #tpu.pipeline_mode<synchronous>, transform_indices = @transform_1, window_bounds = array<i64: 256, 128>}, {pipeline_mode = #tpu.pipeline_mode<synchronous>, transform_indices = @transform_2, window_bounds = array<i64: 128, 128>}, {pipeline_mode = #tpu.pipeline_mode<synchronous>, transform_indices = @transform_3, window_bounds = array<i64: 3, 128>}, {transform_indices = @transform_4, window_bounds = array<i64: 8, 128>}]} {
    %c0 = arith.constant 0 : index
    %c0_0 = arith.constant 0 : index
    %0 = vector.load %arg1[%c0, %c0_0] : memref<8x256xf32, #tpu.memory_space<vmem>>, vector<8x256xf32>
    %c0_1 = arith.constant 0 : index
    %c0_2 = arith.constant 0 : index
    %1 = vector.load %arg2[%c0_1, %c0_2] : memref<256x128xf32, #tpu.memory_space<vmem>>, vector<256x128xf32>
    %cst = arith.constant dense<0.000000e+00> : vector<8x128xf32>
    %2 = tpu.matmul %0, %1, %cst {dimension_numbers = #tpu.dot_dimension_numbers<[1], [0], [0], [1], [0, 0, 1, 1], [], []>} : vector<8x256xf32>, vector<256x128xf32>, vector<8x128xf32> -> vector<8x128xf32>
    %c0_3 = arith.constant 0 : index
    %c0_4 = arith.constant 0 : index
    %3 = vector.load %arg4[%c0_3, %c0_4] : memref<3x128xf32, #tpu.memory_space<vmem>>, vector<1x128xf32>
    %4 = vector.broadcast %3 : vector<1x128xf32> to vector<8x128xf32>
    %5 = arith.addf %2, %4 : vector<8x128xf32>
    %c0_5 = arith.constant 0 : index
    %c0_6 = arith.constant 0 : index
    %6 = vector.load %arg3[%c0_5, %c0_6] : memref<128x128xf32, #tpu.memory_space<vmem>>, vector<128x128xf32>
    %cst_7 = arith.constant dense<0.000000e+00> : vector<8x128xf32>
    %7 = tpu.matmul %5, %6, %cst_7 {dimension_numbers = #tpu.dot_dimension_numbers<[1], [0], [0], [1], [0, 0, 1, 1], [], []>} : vector<8x128xf32>, vector<128x128xf32>, vector<8x128xf32> -> vector<8x128xf32>
    %8 = arith.subf %5, %7 : vector<8x128xf32>
    %9 = arith.mulf %8, %8 : vector<8x128xf32>
    %c0_8 = arith.constant 0 : index
    %c0_9 = arith.constant 0 : index
    %10 = vector.load %arg3[%c0_8, %c0_9] : memref<128x128xf32, #tpu.memory_space<vmem>>, vector<128x128xf32>
    %cst_10 = arith.constant dense<0.000000e+00> : vector<8x128xf32>
    %11 = tpu.matmul %9, %10, %cst_10 {dimension_numbers = #tpu.dot_dimension_numbers<[1], [0], [0], [1], [0, 0, 1, 1], [], []>} : vector<8x128xf32>, vector<128x128xf32>, vector<8x128xf32> -> vector<8x128xf32>
    %cst_11 = arith.constant 9.99999974E-6 : f32
    %12 = vector.broadcast %cst_11 : f32 to vector<8x128xf32>
    %13 = arith.addf %11, %12 : vector<8x128xf32>
    %14 = math.rsqrt %13 : vector<8x128xf32>
    %15 = arith.mulf %8, %14 : vector<8x128xf32>
    %c1 = arith.constant 1 : index
    %c0_12 = arith.constant 0 : index
    %16 = vector.load %arg4[%c1, %c0_12] : memref<3x128xf32, #tpu.memory_space<vmem>>, vector<1x128xf32>
    %17 = vector.broadcast %16 : vector<1x128xf32> to vector<8x128xf32>
    %18 = arith.mulf %15, %17 : vector<8x128xf32>
    %c2 = arith.constant 2 : index
    %c0_13 = arith.constant 0 : index
    %19 = vector.load %arg4[%c2, %c0_13] : memref<3x128xf32, #tpu.memory_space<vmem>>, vector<1x128xf32>
    %20 = vector.broadcast %19 : vector<1x128xf32> to vector<8x128xf32>
    %21 = arith.addf %18, %20 : vector<8x128xf32>
    %c0_14 = arith.constant 0 : index
    %c0_15 = arith.constant 0 : index
    %22 = vector.load %arg5[%c0_14, %c0_15] : memref<8x128xf32, #tpu.memory_space<vmem>>, vector<8x128xf32>
    tpu.vector_store %arg5[%c0_14, %c0_15], %21 {strides = array<i32>} : memref<8x128xf32, #tpu.memory_space<vmem>>, vector<8x128xf32>,
    return
  }
  func.func @transform_0(%arg0: i32) -> (i32, i32) {
    %c0_i32 = arith.constant 0 : i32
    %c0_i32_0 = arith.constant 0 : i32
    return %arg0, %c0_i32 : i32, i32
  }
  func.func @transform_1(%arg0: i32) -> (i32, i32) {
    %c0_i32 = arith.constant 0 : i32
    %c0_i32_0 = arith.constant 0 : i32
    %c0_i32_1 = arith.constant 0 : i32
    return %c0_i32, %c0_i32_0 : i32, i32
  }
  func.func @transform_2(%arg0: i32) -> (i32, i32) {
    %c0_i32 = arith.constant 0 : i32
    %c0_i32_0 = arith.constant 0 : i32
    %c0_i32_1 = arith.constant 0 : i32
    return %c0_i32, %c0_i32_0 : i32, i32
  }
  func.func @transform_3(%arg0: i32) -> (i32, i32) {
    %c0_i32 = arith.constant 0 : i32
    %c0_i32_0 = arith.constant 0 : i32
    %c0_i32_1 = arith.constant 0 : i32
    return %c0_i32, %c0_i32_0 : i32, i32
  }
  func.func @transform_4(%arg0: i32) -> (i32, i32) {
    %c0_i32 = arith.constant 0 : i32
    %c0_i32_0 = arith.constant 0 : i32
    return %arg0, %c0_i32 : i32, i32
  }
}

</mosaic_0001>

<llo_original>
// kernel: tpu_custom_call.1
$region0: #{tpu_custom_call.1}
  #allocation0 [shape = 'u32[]', space=smem, size = 0x4, offset = 0x4, fixed_abs, tag = 'smem constant byte address 0x4 - core index']
  #allocation1 [shape = 'u32[144,128]{1,0:T(1,128)}', space=vmem, size = 0x12000, scoped, tag = 'internal scratch']
  %s0 = inlined_call_operand.hbm [shape: f32[8,256], index: 0, kind: input, shape index: {}]
  %s1 = inlined_call_operand.hbm [shape: f32[256,128], index: 1, kind: input, shape index: {}]
  %s2 = inlined_call_operand.hbm [shape: f32[128,128], index: 2, kind: input, shape index: {}]
  %s3 = inlined_call_operand.vmem [shape: f32[3,128], index: 3, kind: input, shape index: {}]
  %s4 = inlined_call_operand.hbm [shape: f32[8,128], index: 4, kind: output, shape index: {}]
  %s5 = sld [smem:[#allocation0]]
  $region38: #{tpu_custom_call.1} parent=0
    _
  %s7 = ssub.s32 1, %s5
  %s8 = scalar_select 0, %s7, %s5
  $region1: #{tpu_custom_call.1} parent=0
    #allocation2 [shape = 'u8[8192]{0}', space=vmem, size = 0x2000, scoped, tag = 'input window, operand 0, single buffered']
    #allocation3 [shape = 's32[1]{0}', space=sflag, size = 0x4, scoped, tag = 'scoped memory for tpu_custom_call.1']
    #allocation4 [shape = 's32[1]{0}', space=sflag, size = 0x4, scoped, tag = 'scoped memory for tpu_custom_call.1']
    #allocation5 [shape = 'u8[131072]{0}', space=vmem, size = 0x20000, scoped, tag = 'input window, operand 1, single buffered']
    #allocation6 [shape = 's32[1]{0}', space=sflag, size = 0x4, scoped, tag = 'scoped memory for tpu_custom_call.1']
    #allocation7 [shape = 'u8[65536]{0}', space=vmem, size = 0x10000, scoped, tag = 'input window, operand 2, single buffered']
    #allocation8 [shape = 'u8[4096]{0}', space=vmem, size = 0x1000, scoped, tag = 'output window, operand 0, single buffered']
    %9 = vsyncpa [#allocation3], 0
    %10 = vsyncpa [#allocation6], 0
    %11 = vsyncpa [#allocation4], 0
    // Predicated region
    $region2: #{tpu_custom_call.1} parent=1 // pred_check
      _
    $region3: #{tpu_custom_call.1} parent=1 // pred_check_branch
      %13 = sbr.rel (0) target = $region5
    $region4: #{tpu_custom_call.1} parent=1 // pred_region
      %s15 = ssub.s32 256, 256
      %16 = vsyncadd [#allocation3], %s15
      %s18 = sshll.u32 [#allocation2], 4
      %s19 = int_to_ptr.vmem [resolvable:$true] %s18
      %21 = dma.hbm_to_vmem [thread:$0]  %s0, 256, %s19, [#allocation3]
    $region5: #{tpu_custom_call.1} parent=1 // pred_fallthru
      _
    // Predicated region
    $region6: #{tpu_custom_call.1} parent=1 // pred_check
      _
    $region7: #{tpu_custom_call.1} parent=1 // pred_check_branch
      %23 = sbr.rel (0) target = $region9
    $region8: #{tpu_custom_call.1} parent=1 // pred_region
      %s25 = ssub.s32 4096, 4096
      %26 = vsyncadd [#allocation6], %s25
      %s27 = sshll.u32 [#allocation5], 4
      %s28 = int_to_ptr.vmem [resolvable:$true] %s27
      %33 = dma.hbm_to_vmem [thread:$0]  %s1, 4096, %s28, [#allocation6], 128, 128, 8
    $region9: #{tpu_custom_call.1} parent=1 // pred_fallthru
      _
    // Predicated region
    $region10: #{tpu_custom_call.1} parent=1 // pred_check
      _
    $region11: #{tpu_custom_call.1} parent=1 // pred_check_branch
      %35 = sbr.rel (0) target = $region13
    $region12: #{tpu_custom_call.1} parent=1 // pred_region
      %s37 = ssub.s32 2048, 2048
      %38 = vsyncadd [#allocation6], %s37
      %s39 = sshll.u32 [#allocation7], 4
      %s40 = int_to_ptr.vmem [resolvable:$true] %s39
      %45 = dma.hbm_to_vmem [thread:$0]  %s2, 2048, %s40, [#allocation6], 128, 128, 8
    $region13: #{tpu_custom_call.1} parent=1 // pred_fallthru
      _
    // Predicated region
    $region14: #{tpu_custom_call.1} parent=1 // pred_check
      _
    $region15: #{tpu_custom_call.1} parent=1 // pred_check_branch
      %47 = sbr.rel (0) target = $region17
    $region16: #{tpu_custom_call.1} parent=1 // pred_region
      _
    $region17: #{tpu_custom_call.1} parent=1 // pred_fallthru
      _
    // Predicated region
    $region18: #{tpu_custom_call.1} parent=1 // pred_check
      _
    $region19: #{tpu_custom_call.1} parent=1 // pred_check_branch
      %49 = sbr.rel (0) target = $region21
    $region20: #{tpu_custom_call.1} parent=1 // pred_region
      %50 = dma.done [#allocation3], 256
    $region21: #{tpu_custom_call.1} parent=1 // pred_fallthru
      _
    // Predicated region
    $region22: #{tpu_custom_call.1} parent=1 // pred_check
      _
    $region23: #{tpu_custom_call.1} parent=1 // pred_check_branch
      %52 = sbr.rel (0) target = $region25
    $region24: #{tpu_custom_call.1} parent=1 // pred_region
      %53 = dma.done [#allocation6], 4096
    $region25: #{tpu_custom_call.1} parent=1 // pred_fallthru
      _
    // Predicated region
    $region26: #{tpu_custom_call.1} parent=1 // pred_check
      _
    $region27: #{tpu_custom_call.1} parent=1 // pred_check_branch
      %55 = sbr.rel (0) target = $region29
    $region28: #{tpu_custom_call.1} parent=1 // pred_region
      %56 = dma.done [#allocation6], 2048
    $region29: #{tpu_custom_call.1} parent=1 // pred_fallthru
      _
    %v57 = vld [vmem:[#allocation2] sm:$0xff]
    %v58 = vld [vmem:[#allocation2 + $0x8] sm:$0xff]
    %v59 = vld [vmem:[#allocation5] sm:$0xff]
    %v60 = vld [vmem:[#allocation5 + $0x8] sm:$0xff]
    %v61 = vld [vmem:[#allocation5 + $0x10] sm:$0xff]
    %v62 = vld [vmem:[#allocation5 + $0x18] sm:$0xff]
    %v63 = vld [vmem:[#allocation5 + $0x20] sm:$0xff]
    %v64 = vld [vmem:[#allocation5 + $0x28] sm:$0xff]
    %v65 = vld [vmem:[#allocation5 + $0x30] sm:$0xff]
    %v66 = vld [vmem:[#allocation5 + $0x38] sm:$0xff]
    %v67 = vld [vmem:[#allocation5 + $0x40] sm:$0xff]
    %v68 = vld [vmem:[#allocation5 + $0x48] sm:$0xff]
    %v69 = vld [vmem:[#allocation5 + $0x50] sm:$0xff]
    %v70 = vld [vmem:[#allocation5 + $0x58] sm:$0xff]
    %v71 = vld [vmem:[#allocation5 + $0x60] sm:$0xff]
    %v72 = vld [vmem:[#allocation5 + $0x68] sm:$0xff]
    %v73 = vld [vmem:[#allocation5 + $0x70] sm:$0xff]
    %v74 = vld [vmem:[#allocation5 + $0x78] sm:$0xff]
    %v75 = vld [vmem:[#allocation5 + $0x80] sm:$0xff]
    %v76 = vld [vmem:[#allocation5 + $0x88] sm:$0xff]
    %v77 = vld [vmem:[#allocation5 + $0x90] sm:$0xff]
    %v78 = vld [vmem:[#allocation5 + $0x98] sm:$0xff]
    %v79 = vld [vmem:[#allocation5 + $0xa0] sm:$0xff]
    %v80 = vld [vmem:[#allocation5 + $0xa8] sm:$0xff]
    %v81 = vld [vmem:[#allocation5 + $0xb0] sm:$0xff]
    %v82 = vld [vmem:[#allocation5 + $0xb8] sm:$0xff]
    %v83 = vld [vmem:[#allocation5 + $0xc0] sm:$0xff]
    %v84 = vld [vmem:[#allocation5 + $0xc8] sm:$0xff]
    %v85 = vld [vmem:[#allocation5 + $0xd0] sm:$0xff]
    %v86 = vld [vmem:[#allocation5 + $0xd8] sm:$0xff]
    %v87 = vld [vmem:[#allocation5 + $0xe0] sm:$0xff]
    %v88 = vld [vmem:[#allocation5 + $0xe8] sm:$0xff]
    %v89 = vld [vmem:[#allocation5 + $0xf0] sm:$0xff]
    %v90 = vld [vmem:[#allocation5 + $0xf8] sm:$0xff]
    %v91 = vld [vmem:[%s3] sm:$0x1]
    %v92 = vlaneseq
    %v93 = vshrl.u32 %v92, 7
    %v94 = vsub.s32 0, %v93
    %v95 = vrot.slane %v91, %v94
    %96 = vmatprep.subr.mxu0 0.0
    %97 = vmatpush1.msra.mxu0 %v59
    %98 = vmatprep.subr.mxu0 0.0
    %99 = vmatpush1.msra.mxu0 %v60
    %100 = vmatprep.subr.mxu0 0.0
    %101 = vmatpush1.msra.mxu0 %v61
    %102 = vmatprep.subr.mxu0 0.0
    %103 = vmatpush1.msra.mxu0 %v62
    %104 = vmatprep.subr.mxu0 0.0
    %105 = vmatpush1.msra.mxu0 %v63
    %106 = vmatprep.subr.mxu0 0.0
    %107 = vmatpush1.msra.mxu0 %v64
    %108 = vmatprep.subr.mxu0 0.0
    %109 = vmatpush1.msra.mxu0 %v65
    %110 = vmatprep.subr.mxu0 0.0
    %111 = vmatpush1.msra.mxu0 %v66
    %112 = vmatprep.subr.mxu0 0.0
    %113 = vmatpush1.msra.mxu0 %v67
    %114 = vmatprep.subr.mxu0 0.0
    %115 = vmatpush1.msra.mxu0 %v68
    %116 = vmatprep.subr.mxu0 0.0
    %117 = vmatpush1.msra.mxu0 %v69
    %118 = vmatprep.subr.mxu0 0.0
    %119 = vmatpush1.msra.mxu0 %v70
    %120 = vmatprep.subr.mxu0 0.0
    %121 = vmatpush1.msra.mxu0 %v71
    %122 = vmatprep.subr.mxu0 0.0
    %123 = vmatpush1.msra.mxu0 %v72
    %124 = vmatprep.subr.mxu0 0.0
    %125 = vmatpush1.msra.mxu0 %v73
    %126 = vmatprep.subr.mxu0 0.0
    %127 = vmatpush1.msra.mxu0 %v74
    %128 = vmatprep.subr.mxu0 0.0
    %129 = vmatpush1.msra.mxu0 %v75
    %130 = vmatprep.subr.mxu0 0.0
    %131 = vmatpush1.msra.mxu0 %v76
    %132 = vmatprep.subr.mxu0 0.0
    %133 = vmatpush1.msra.mxu0 %v77
    %134 = vmatprep.subr.mxu0 0.0
    %135 = vmatpush1.msra.mxu0 %v78
    %136 = vmatprep.subr.mxu0 0.0
    %137 = vmatpush1.msra.mxu0 %v79
    %138 = vmatprep.subr.mxu0 0.0
    %139 = vmatpush1.msra.mxu0 %v80
    %140 = vmatprep.subr.mxu0 0.0
    %141 = vmatpush1.msra.mxu0 %v81
    %142 = vmatprep.subr.mxu0 0.0
    %143 = vmatpush1.msra.mxu0 %v82
    %144 = vmatprep.subr.mxu0 0.0
    %145 = vmatpush1.msra.mxu0 %v83
    %146 = vmatprep.subr.mxu0 0.0
    %147 = vmatpush1.msra.mxu0 %v84
    %148 = vmatprep.subr.mxu0 0.0
    %149 = vmatpush1.msra.mxu0 %v85
    %150 = vmatprep.subr.mxu0 0.0
    %151 = vmatpush1.msra.mxu0 %v86
    %152 = vmatprep.subr.mxu0 0.0
    %153 = vmatpush1.msra.mxu0 %v87
    %154 = vmatprep.subr.mxu0 0.0
    %155 = vmatpush1.msra.mxu0 %v88
    %156 = vmatprep.subr.mxu0 0.0
    %157 = vmatpush1.msra.mxu0 %v89
    %158 = vmatprep.subr.mxu0 0.0
    %159 = vmatpush1.msra.mxu0 %v90
    %160 = vmatprep.mubr.f32.mxu0 %v58
    %161 = vmatmul.mubr.f32.gmra.mrb[0].mxu0 %v57
    %v162 = vpop.f32.mrb[0].mxu0
    %v163 = vadd.f32 %v95, %v162
    %v164 = vpop.f32.mrb[0].mxu0
    %165 = vdwg.mxu0
    %v166 = vld [vmem:[#allocation7] sm:$0xff]
    %v167 = vld [vmem:[#allocation7 + $0x8] sm:$0xff]
    %v168 = vld [vmem:[#allocation7 + $0x10] sm:$0xff]
    %v169 = vld [vmem:[#allocation7 + $0x18] sm:$0xff]
    %v170 = vld [vmem:[#allocation7 + $0x20] sm:$0xff]
    %v171 = vld [vmem:[#allocation7 + $0x28] sm:$0xff]
    %v172 = vld [vmem:[#allocation7 + $0x30] sm:$0xff]
    %v173 = vld [vmem:[#allocation7 + $0x38] sm:$0xff]
    %v174 = vld [vmem:[#allocation7 + $0x40] sm:$0xff]
    %v175 = vld [vmem:[#allocation7 + $0x48] sm:$0xff]
    %v176 = vld [vmem:[#allocation7 + $0x50] sm:$0xff]
    %v177 = vld [vmem:[#allocation7 + $0x58] sm:$0xff]
    %v178 = vld [vmem:[#allocation7 + $0x60] sm:$0xff]
    %v179 = vld [vmem:[#allocation7 + $0x68] sm:$0xff]
    %v180 = vld [vmem:[#allocation7 + $0x70] sm:$0xff]
    %v181 = vld [vmem:[#allocation7 + $0x78] sm:$0xff]
    %182 = vmatprep.subr.mxu0 0.0
    %183 = vmatpush1.msra.mxu0 %v166
    %184 = vmatprep.subr.mxu0 0.0
    %185 = vmatpush1.msra.mxu0 %v167
    %186 = vmatprep.subr.mxu0 0.0
    %187 = vmatpush1.msra.mxu0 %v168
    %188 = vmatprep.subr.mxu0 0.0
    %189 = vmatpush1.msra.mxu0 %v169
    %190 = vmatprep.subr.mxu0 0.0
    %191 = vmatpush1.msra.mxu0 %v170
    %192 = vmatprep.subr.mxu0 0.0
    %193 = vmatpush1.msra.mxu0 %v171
    %194 = vmatprep.subr.mxu0 0.0
    %195 = vmatpush1.msra.mxu0 %v172
    %196 = vmatprep.subr.mxu0 0.0
    %197 = vmatpush1.msra.mxu0 %v173
    %198 = vmatprep.subr.mxu0 0.0
    %199 = vmatpush1.msra.mxu0 %v174
    %200 = vmatprep.subr.mxu0 0.0
    %201 = vmatpush1.msra.mxu0 %v175
    %202 = vmatprep.subr.mxu0 0.0
    %203 = vmatpush1.msra.mxu0 %v176
    %204 = vmatprep.subr.mxu0 0.0
    %205 = vmatpush1.msra.mxu0 %v177
    %206 = vmatprep.subr.mxu0 0.0
    %207 = vmatpush1.msra.mxu0 %v178
    %208 = vmatprep.subr.mxu0 0.0
    %209 = vmatpush1.msra.mxu0 %v179
    %210 = vmatprep.subr.mxu0 0.0
    %211 = vmatpush1.msra.mxu0 %v180
    %212 = vmatprep.subr.mxu0 0.0
    %213 = vmatpush1.msra.mxu0 %v181
    %214 = vmatprep.subr.mxu0 0.0
    %215 = vmatpush1.msra.mxu0 0.0
    %216 = vmatprep.subr.mxu0 0.0
    %217 = vmatpush1.msra.mxu0 0.0
    %218 = vmatprep.subr.mxu0 0.0
    %219 = vmatpush1.msra.mxu0 0.0
    %220 = vmatprep.subr.mxu0 0.0
    %221 = vmatpush1.msra.mxu0 0.0
    %222 = vmatprep.subr.mxu0 0.0
    %223 = vmatpush1.msra.mxu0 0.0
    %224 = vmatprep.subr.mxu0 0.0
    %225 = vmatpush1.msra.mxu0 0.0
    %226 = vmatprep.subr.mxu0 0.0
    %227 = vmatpush1.msra.mxu0 0.0
    %228 = vmatprep.subr.mxu0 0.0
    %229 = vmatpush1.msra.mxu0 0.0
    %230 = vmatprep.subr.mxu0 0.0
    %231 = vmatpush1.msra.mxu0 0.0
    %232 = vmatprep.subr.mxu0 0.0
    %233 = vmatpush1.msra.mxu0 0.0
    %234 = vmatprep.subr.mxu0 0.0
    %235 = vmatpush1.msra.mxu0 0.0
    %236 = vmatprep.subr.mxu0 0.0
    %237 = vmatpush1.msra.mxu0 0.0
    %238 = vmatprep.subr.mxu0 0.0
    %239 = vmatpush1.msra.mxu0 0.0
    %240 = vmatprep.subr.mxu0 0.0
    %241 = vmatpush1.msra.mxu0 0.0
    %242 = vmatprep.subr.mxu0 0.0
    %243 = vmatpush1.msra.mxu0 0.0
    %244 = vmatprep.subr.mxu0 0.0
    %245 = vmatpush1.msra.mxu0 0.0
    %246 = vmatprep.mubr.f32.mxu0 0.0
    %247 = vmatmul.mubr.f32.gmra.mrb[0].mxu0 %v163
    %v248 = vpop.f32.mrb[0].mxu0
    %v249 = vadd.f32 0.0, %v248
    %v250 = vpop.f32.mrb[0].mxu0
    %251 = vdwg.mxu0
    %v252 = vsub.f32 %v163, %v249
    %v253 = vmul.f32 %v252, %v252
    %254 = vmatprep.subr.mxu0 0.0
    %255 = vmatpush1.msra.mxu0 %v166
    %256 = vmatprep.subr.mxu0 0.0
    %257 = vmatpush1.msra.mxu0 %v167
    %258 = vmatprep.subr.mxu0 0.0
    %259 = vmatpush1.msra.mxu0 %v168
    %260 = vmatprep.subr.mxu0 0.0
    %261 = vmatpush1.msra.mxu0 %v169
    %262 = vmatprep.subr.mxu0 0.0
    %263 = vmatpush1.msra.mxu0 %v170
    %264 = vmatprep.subr.mxu0 0.0
    %265 = vmatpush1.msra.mxu0 %v171
    %266 = vmatprep.subr.mxu0 0.0
    %267 = vmatpush1.msra.mxu0 %v172
    %268 = vmatprep.subr.mxu0 0.0
    %269 = vmatpush1.msra.mxu0 %v173
    %270 = vmatprep.subr.mxu0 0.0
    %271 = vmatpush1.msra.mxu0 %v174
    %272 = vmatprep.subr.mxu0 0.0
    %273 = vmatpush1.msra.mxu0 %v175
    %274 = vmatprep.subr.mxu0 0.0
    %275 = vmatpush1.msra.mxu0 %v176
    %276 = vmatprep.subr.mxu0 0.0
    %277 = vmatpush1.msra.mxu0 %v177
    %278 = vmatprep.subr.mxu0 0.0
    %279 = vmatpush1.msra.mxu0 %v178
    %280 = vmatprep.subr.mxu0 0.0
    %281 = vmatpush1.msra.mxu0 %v179
    %282 = vmatprep.subr.mxu0 0.0
    %283 = vmatpush1.msra.mxu0 %v180
    %284 = vmatprep.subr.mxu0 0.0
    %285 = vmatpush1.msra.mxu0 %v181
    %286 = vmatprep.subr.mxu0 0.0
    %287 = vmatpush1.msra.mxu0 0.0
    %288 = vmatprep.subr.mxu0 0.0
    %289 = vmatpush1.msra.mxu0 0.0
    %290 = vmatprep.subr.mxu0 0.0
    %291 = vmatpush1.msra.mxu0 0.0
    %292 = vmatprep.subr.mxu0 0.0
    %293 = vmatpush1.msra.mxu0 0.0
    %294 = vmatprep.subr.mxu0 0.0
    %295 = vmatpush1.msra.mxu0 0.0
    %296 = vmatprep.subr.mxu0 0.0
    %297 = vmatpush1.msra.mxu0 0.0
    %298 = vmatprep.subr.mxu0 0.0
    %299 = vmatpush1.msra.mxu0 0.0
    %300 = vmatprep.subr.mxu0 0.0
    %301 = vmatpush1.msra.mxu0 0.0
    %302 = vmatprep.subr.mxu0 0.0
    %303 = vmatpush1.msra.mxu0 0.0
    %304 = vmatprep.subr.mxu0 0.0
    %305 = vmatpush1.msra.mxu0 0.0
    %306 = vmatprep.subr.mxu0 0.0
    %307 = vmatpush1.msra.mxu0 0.0
    %308 = vmatprep.subr.mxu0 0.0
    %309 = vmatpush1.msra.mxu0 0.0
    %310 = vmatprep.subr.mxu0 0.0
    %311 = vmatpush1.msra.mxu0 0.0
    %312 = vmatprep.subr.mxu0 0.0
    %313 = vmatpush1.msra.mxu0 0.0
    %314 = vmatprep.subr.mxu0 0.0
    %315 = vmatpush1.msra.mxu0 0.0
    %316 = vmatprep.subr.mxu0 0.0
    %317 = vmatpush1.msra.mxu0 0.0
    %318 = vmatprep.mubr.f32.mxu0 0.0
    %319 = vmatmul.mubr.f32.gmra.mrb[0].mxu0 %v253
    %v320 = vpop.f32.mrb[0].mxu0
    %v321 = vadd.f32 1e-05, %v320
    %v322 = vpop.f32.mrb[0].mxu0
    %323 = vdwg.mxu0
    %v324 = vrsqrt.pop %v321
    %v325 = vmul.f32 %v252, %v324
    %v326 = vld [vmem:[%s3 + $0x1] sm:$0x1]
    %v327 = vlaneseq
    %v328 = vshrl.u32 %v327, 7
    %v329 = vsub.s32 0, %v328
    %v330 = vrot.slane %v326, %v329
    %v331 = vmul.f32 %v325, %v330
    %v332 = vld [vmem:[%s3 + $0x2] sm:$0x1]
    %v333 = vlaneseq
    %v334 = vshrl.u32 %v333, 7
    %v335 = vsub.s32 0, %v334
    %v336 = vrot.slane %v332, %v335
    %v337 = vadd.f32 %v331, %v336
    %338 = vst [vmem:[#allocation8] sm:$0xff] %v337
    // Predicated region
    $region30: #{tpu_custom_call.1} parent=1 // pred_check
      _
    $region31: #{tpu_custom_call.1} parent=1 // pred_check_branch
      %340 = sbr.rel (0) target = $region33
    $region32: #{tpu_custom_call.1} parent=1 // pred_region
      %s342 = ssub.s32 128, 128
      %343 = vsyncadd [#allocation4], %s342
      %s345 = sshll.u32 [#allocation8], 4
      %s346 = int_to_ptr.vmem [resolvable:$true] %s345
      %348 = dma.vmem_to_hbm [thread:$0]  %s346, 128, %s4, [#allocation4]
    $region33: #{tpu_custom_call.1} parent=1 // pred_fallthru
      _
    // Predicated region
    $region34: #{tpu_custom_call.1} parent=1 // pred_check
      _
    $region35: #{tpu_custom_call.1} parent=1 // pred_check_branch
      %350 = sbr.rel (0) target = $region37
    $region36: #{tpu_custom_call.1} parent=1 // pred_region
      %351 = dma.done [#allocation4], 128
    $region37: #{tpu_custom_call.1} parent=1 // pred_fallthru
      _
    %352 = vsyncpa [#allocation3], 1
    %353 = vsyncpa [#allocation6], 1
    %354 = vsyncpa [#allocation4], 1

</llo_original>
